<compile_context>
chip_gen: v5e
topology: v5e:2x2
jax: 0.10.0
libtpu: 0.0.40
codegen_flags: <defaults>
</compile_context>

<pallas_src>
import math

import jax
import jax.numpy as jnp
from jax.experimental import pallas as pl
from jax.experimental.pallas import tpu as pltpu

_MAX_TILE_LANES = 1024                   # lane-tile cap (multiple of 128)
_MAX_TILE_ROWS = 1024                    # row-tile cap (multiple of 8/16/32)
_TARGET_BLOCK_BYTES = 4 * 1024 * 1024    # ~4 MiB per block


def _round_up(n: int, m: int) -> int:
    return ((n + m - 1) // m) * m


def _sublane(dtype) -> int:
    # Minimum sublane quantum per packed dtype: (8,128) f32, (16,128) bf16, (32,128) int8.
    return {4: 8, 2: 16, 1: 32}.get(jnp.dtype(dtype).itemsize, 8)


def _linreg_kernel(w_ref, b_ref, x_ref, o_ref):
    # w_ref / b_ref: shape-(1,) f32 scalars in SMEM.
    # x_ref / o_ref: (tile_m, tile_n) VMEM tiles; partial boundary blocks are
    # masked by Pallas on writeback (elementwise op, so OOB garbage reads never
    # contaminate valid output elements).
    o_ref[...] = (w_ref[0] * x_ref[...] + b_ref[0]).astype(o_ref.dtype)


def _as_2d(x: jax.Array):
    """Copy-free 2-D view of x: collapse leading dims; if the trailing dim is
    narrow (<128 lanes) but the element count folds evenly into a lane-dense
    slab, re-fold it (pure metadata reshape of contiguous data)."""
    total = int(x.size)
    if x.ndim >= 2:
        rows, cols = math.prod(x.shape[:-1]), int(x.shape[-1])
    else:
        rows, cols = 1, max(total, 1)
    if cols < 128 and total > 0 and total % 128 == 0:
        lanes = 128
        while lanes * 2 <= _MAX_TILE_LANES and total % (lanes * 2) == 0:
            lanes *= 2
        rows, cols = total // lanes, lanes
    return x.reshape(rows, cols), rows, cols


def linear_regression_forward(x: jax.Array, weights: jax.Array, bias: jax.Array) -> jax.Array:
    """y = weights * x + bias  (weights, bias are shape-(1,) scalars). Any input shape."""
    orig_shape = x.shape
    x2d, rows, cols = _as_2d(x)
    itemsize = jnp.dtype(x.dtype).itemsize
    sub = _sublane(x.dtype)

    # Lane tile: the whole last dim when it fits (block == full array dim is
    # always legal, even if not a multiple of 128); otherwise a 128-multiple
    # tile with a masked partial tail block.
    tile_n = cols if cols <= _MAX_TILE_LANES else _MAX_TILE_LANES

    # Row tile: multiple of the sublane quantum, sized so one block is ~4 MiB.
    budget_rows = max(sub, (_TARGET_BLOCK_BYTES // max(tile_n * itemsize, 1)) // sub * sub)
    tile_m = min(_MAX_TILE_ROWS, budget_rows, _round_up(rows, sub))

    grid = (pl.cdiv(rows, tile_m), pl.cdiv(cols, tile_n))

    y2d = pl.pallas_call(
        _linreg_kernel,
        out_shape=jax.ShapeDtypeStruct((rows, cols), x.dtype),
        grid=grid,
        in_specs=[
            pl.BlockSpec(memory_space=pltpu.SMEM),                # weights (scalar, untiled)
            pl.BlockSpec(memory_space=pltpu.SMEM),                # bias    (scalar, untiled)
            pl.BlockSpec((tile_m, tile_n), lambda i, j: (i, j)),  # tiled input
        ],
        out_specs=pl.BlockSpec((tile_m, tile_n), lambda i, j: (i, j)),
        compiler_params=pltpu.CompilerParams(
            dimension_semantics=("parallel", "parallel"),
            vmem_limit_bytes=48 * 1024 * 1024,  # 2 tensors x 2 buffers x 4 MiB = 16 MiB + headroom
        ),
        cost_estimate=pl.CostEstimate(
            flops=2 * rows * cols,
            transcendentals=0,
            bytes_accessed=2 * rows * cols * itemsize,
        ),
    )(weights, bias, x2d)

    # rows * cols == x.size (no padding), so this reshape is free.
    return y2d.reshape(orig_shape)


if __name__ == "__main__":
    key = jax.random.PRNGKey(0)
    kw, kb, k1, k2, k3, k4 = jax.random.split(key, 6)

    # Parameters match torch.randn(1) shapes.
    weights = jax.random.normal(kw, (1,), dtype=jnp.float32)
    bias = jax.random.normal(kb, (1,), dtype=jnp.float32)

    def ref(v):
        return weights[0] * v + bias[0]

    # Canonical linear-regression input: (batch, 1).
    x1 = jax.random.normal(k1, (64, 1), dtype=jnp.float32)
    # Small unaligned shape: exercises masked partial row/lane tail (no pad/slice copies).
    x2 = jax.random.normal(k2, (3, 50), dtype=jnp.float32)
    # Lane-aligned shape: blocked directly over its native layout, full-lane stores.
    x3 = jax.random.normal(k3, (16, 256), dtype=jnp.float32)
    # Narrow trailing dim that re-folds copy-free into a lane-dense (1, 128) slab.
    x4 = jax.random.normal(k4, (64, 2), dtype=jnp.float32)

    for x in (x1, x2, x3, x4):
        y = jax.block_until_ready(linear_regression_forward(x, weights, bias))
        assert y.shape == x.shape and y.dtype == x.dtype
        assert jnp.allclose(y, ref(x), atol=1e-6, rtol=1e-6), f"mismatch for shape {x.shape}"

    print("KERNEL_OK")
</pallas_src>

<mosaic_0001>
module attributes {stable_mosaic.version = 11 : i64} {
  func.func @_linreg_kernel(%arg0: i32, %arg1: i32, %arg2: memref<1xf32, #tpu.memory_space<smem>>, %arg3: memref<1xf32, #tpu.memory_space<smem>>, %arg4: memref<64x1xf32, #tpu.memory_space<vmem>>, %arg5: memref<64x1xf32, #tpu.memory_space<vmem>>) attributes {dimension_semantics = [#tpu.dimension_semantics<parallel>, #tpu.dimension_semantics<parallel>], iteration_bounds = array<i64: 1, 1>, scalar_prefetch = 0 : i64, scratch_operands = 0 : i64, tpu.core_type = #tpu.core_type<tc>, window_params = [{transform_indices = @transform_0, window_bounds = array<i64: 1>}, {transform_indices = @transform_1, window_bounds = array<i64: 1>}, {transform_indices = @transform_2, window_bounds = array<i64: 64, 1>}, {transform_indices = @transform_3, window_bounds = array<i64: 64, 1>}]} {
    %c0 = arith.constant 0 : index
    %0 = memref.load %arg2[%c0] : memref<1xf32, #tpu.memory_space<smem>>
    %c0_0 = arith.constant 0 : index
    %c0_1 = arith.constant 0 : index
    %1 = vector.load %arg4[%c0_0, %c0_1] : memref<64x1xf32, #tpu.memory_space<vmem>>, vector<64x1xf32>
    %2 = vector.broadcast %0 : f32 to vector<64x1xf32>
    %3 = arith.mulf %2, %1 : vector<64x1xf32>
    %c0_2 = arith.constant 0 : index
    %4 = memref.load %arg3[%c0_2] : memref<1xf32, #tpu.memory_space<smem>>
    %5 = vector.broadcast %4 : f32 to vector<64x1xf32>
    %6 = arith.addf %3, %5 : vector<64x1xf32>
    %c0_3 = arith.constant 0 : index
    %c0_4 = arith.constant 0 : index
    %7 = vector.load %arg5[%c0_3, %c0_4] : memref<64x1xf32, #tpu.memory_space<vmem>>, vector<64x1xf32>
    tpu.vector_store %arg5[%c0_3, %c0_4], %6 {strides = array<i32>} : memref<64x1xf32, #tpu.memory_space<vmem>>, vector<64x1xf32>,
    return
  }
  func.func @transform_0(%arg0: i32, %arg1: i32) -> i32 {
    %c0_i32 = arith.constant 0 : i32
    %c0_i32_0 = arith.constant 0 : i32
    return %c0_i32 : i32
  }
  func.func @transform_1(%arg0: i32, %arg1: i32) -> i32 {
    %c0_i32 = arith.constant 0 : i32
    %c0_i32_0 = arith.constant 0 : i32
    return %c0_i32 : i32
  }
  func.func @transform_2(%arg0: i32, %arg1: i32) -> (i32, i32) {
    %c0_i32 = arith.constant 0 : i32
    return %arg0, %arg1 : i32, i32
  }
  func.func @transform_3(%arg0: i32, %arg1: i32) -> (i32, i32) {
    %c0_i32 = arith.constant 0 : i32
    return %arg0, %arg1 : i32, i32
  }
}

</mosaic_0001>

<llo_original>
// kernel: tpu_custom_call.1
$region0: #{tpu_custom_call.1}
  #allocation0 [shape = 'u32[]', space=smem, size = 0x4, offset = 0x4, fixed_abs, tag = 'smem constant byte address 0x4 - core index']
  #allocation1 [shape = 'u32[72,128]{1,0:T(1,128)}', space=vmem, size = 0x9000, scoped, tag = 'internal scratch']
  #allocation2 [shape = 'f32[1]{0:T(128)S(6)}', space=smem, size = 0x200, scoped, tag = 'scoped memory for tpu_custom_call.1']
  #allocation3 [shape = 'f32[1]{0:T(128)S(6)}', space=smem, size = 0x200, scoped, tag = 'scoped memory for tpu_custom_call.1']
  %s0 = inlined_call_operand.<no memory space> [shape: f32[1], index: 0, kind: input, shape index: {}]
  %s1 = inlined_call_operand.<no memory space> [shape: f32[1], index: 1, kind: input, shape index: {}]
  %s2 = inlined_call_operand.vmem [shape: f32[64,1], index: 2, kind: input, shape index: {}]
  %s3 = inlined_call_operand.vmem [shape: f32[64,1], index: 3, kind: output, shape index: {}]
  %s4 = sld [smem:[#allocation0]]
  $region22: #{tpu_custom_call.1} parent=0
    _
  %s6 = ssub.s32 1, %s4
  %s7 = scalar_select 0, %s6, %s4
  %8 = sst [smem:[#allocation2]] %s0
  %9 = sst [smem:[#allocation3]] %s1
  // Predicated region
  $region2: #{tpu_custom_call.1} parent=0 // pred_check
    _
  $region3: #{tpu_custom_call.1} parent=0 // pred_check_branch
    %11 = sbr.rel (0) target = $region5
  $region4: #{tpu_custom_call.1} parent=0 // pred_region
    _
  $region5: #{tpu_custom_call.1} parent=0 // pred_fallthru
    _
  // Predicated region
  $region6: #{tpu_custom_call.1} parent=0 // pred_check
    _
  $region7: #{tpu_custom_call.1} parent=0 // pred_check_branch
    %13 = sbr.rel (0) target = $region9
  $region8: #{tpu_custom_call.1} parent=0 // pred_region
    _
  $region9: #{tpu_custom_call.1} parent=0 // pred_fallthru
    _
  // Predicated region
  $region10: #{tpu_custom_call.1} parent=0 // pred_check
    _
  $region11: #{tpu_custom_call.1} parent=0 // pred_check_branch
    %15 = sbr.rel (0) target = $region13
  $region12: #{tpu_custom_call.1} parent=0 // pred_region
    _
  $region13: #{tpu_custom_call.1} parent=0 // pred_fallthru
    _
  %s16 = sld [smem:[#allocation2]]
  %v17 = vld [vmem:[%s2] sm:$0xff]
  %v18 = vld [vmem:[%s2 + $0x8] sm:$0xff]
  %v19 = vld [vmem:[%s2 + $0x10] sm:$0xff]
  %v20 = vld [vmem:[%s2 + $0x18] sm:$0xff]
  %v21 = vld [vmem:[%s2 + $0x20] sm:$0xff]
  %v22 = vld [vmem:[%s2 + $0x28] sm:$0xff]
  %v23 = vld [vmem:[%s2 + $0x30] sm:$0xff]
  %v24 = vld [vmem:[%s2 + $0x38] sm:$0xff]
  %v25 = vstv %s16
  %v26 = vmul.f32 %v25, %v17
  %v27 = vmul.f32 %v25, %v18
  %v28 = vmul.f32 %v25, %v19
  %v29 = vmul.f32 %v25, %v20
  %v30 = vmul.f32 %v25, %v21
  %v31 = vmul.f32 %v25, %v22
  %v32 = vmul.f32 %v25, %v23
  %v33 = vmul.f32 %v25, %v24
  %s34 = sld [smem:[#allocation3]]
  %v35 = vstv %s34
  %v36 = vadd.f32 %v26, %v35
  %v37 = vadd.f32 %v27, %v35
  %v38 = vadd.f32 %v28, %v35
  %v39 = vadd.f32 %v29, %v35
  %v40 = vadd.f32 %v30, %v35
  %v41 = vadd.f32 %v31, %v35
  %v42 = vadd.f32 %v32, %v35
  %v43 = vadd.f32 %v33, %v35
  %vm44 = vcmask 7168
  %45 = vst.msk [vmem:[%s3] sm:$0xff] %vm44, %v36
  %46 = vst.msk [vmem:[%s3 + $0x8] sm:$0xff] %vm44, %v37
  %47 = vst.msk [vmem:[%s3 + $0x10] sm:$0xff] %vm44, %v38
  %48 = vst.msk [vmem:[%s3 + $0x18] sm:$0xff] %vm44, %v39
  %49 = vst.msk [vmem:[%s3 + $0x20] sm:$0xff] %vm44, %v40
  %50 = vst.msk [vmem:[%s3 + $0x28] sm:$0xff] %vm44, %v41
  %51 = vst.msk [vmem:[%s3 + $0x30] sm:$0xff] %vm44, %v42
  %52 = vst.msk [vmem:[%s3 + $0x38] sm:$0xff] %vm44, %v43
  // Predicated region
  $region14: #{tpu_custom_call.1} parent=0 // pred_check
    _
  $region15: #{tpu_custom_call.1} parent=0 // pred_check_branch
    %54 = sbr.rel (0) target = $region17
  $region16: #{tpu_custom_call.1} parent=0 // pred_region
    _
  $region17: #{tpu_custom_call.1} parent=0 // pred_fallthru
    _
  // Predicated region
  $region18: #{tpu_custom_call.1} parent=0 // pred_check
    _
  $region19: #{tpu_custom_call.1} parent=0 // pred_check_branch
    %56 = sbr.rel (0) target = $region21
  $region20: #{tpu_custom_call.1} parent=0 // pred_region
    _
  $region21: #{tpu_custom_call.1} parent=0 // pred_fallthru
    _

</llo_original>
